<compile_context>
chip_gen: v5e
topology: v5e:2x2
jax: 0.10.0
libtpu: 0.0.40
codegen_flags: <defaults>
</compile_context>

<pallas_src>
import functools

import jax
import jax.numpy as jnp
from jax.experimental import pallas as pl
from jax.experimental.pallas import tpu as pltpu

INPUT_SIZE = 8
HIDDEN_SIZE = 32
OUTPUT_SIZE = 4
NUM_HIDDEN = 3
FEAT = INPUT_SIZE + OUTPUT_SIZE - 1  # 11
BATCH = 8

# ----- static packed-parameter layout (sublane-aligned) ----------------------
# One f32 buffer (P_ROWS, HIDDEN_SIZE).  Each layer contributes its weight rows
# (starting at a multiple of 8) followed by one bias row, then pads to the next
# multiple of 8.  Narrow layers are zero-padded on the lane axis.
_LAYER_DIMS = ([(INPUT_SIZE, HIDDEN_SIZE)]
               + [(HIDDEN_SIZE, HIDDEN_SIZE)] * NUM_HIDDEN
               + [(HIDDEN_SIZE, OUTPUT_SIZE)])


def _round_up(x, m):
    return (x + m - 1) // m * m


_W_OFF, _B_OFF = [], []
_off = 0
for _in_d, _out_d in _LAYER_DIMS:
    assert _in_d % 8 == 0
    _W_OFF.append(_off)                 # multiple of 8 -> aligned weight slice
    _off += _in_d
    _B_OFF.append(_off)                 # also a multiple of 8
    _off = _round_up(_off + 1, 8)       # pad so the next layer starts aligned
P_ROWS = _off                           # = 176 for the default sizes


def _default_compute_dtype():
    """bf16 tanh/VPU path exists on v6e / v7x; keep f32 on v5e and older."""
    try:
        kind = jax.devices()[0].device_kind.lower()
    except Exception:
        return jnp.float32
    if "v6" in kind or "v7" in kind:
        return jnp.bfloat16
    return jnp.float32


# ----- kernel -----------------------------------------------------------------
def actor_kernel(s_ref, p_ref, out_ref, *, batch, batch_tile, lane_dense,
                 compute_dtype, mask_tail_rows):
    """s_ref: (Bt, FEAT), p_ref: (P_ROWS, HIDDEN).
    out_ref: (Bt, 1) column (grid-less path) or (Bt//128, 128) lane-dense slab.
    """
    s = s_ref[...]                                    # (Bt, FEAT) f32
    p = p_ref[...]                                    # (P_ROWS, HIDDEN) f32

    h = s[:, :INPUT_SIZE]                             # (Bt, IN)
    tail = s[:, INPUT_SIZE:]                          # (Bt, OUT - 1)

    # --- cal_coefficients: fully unrolled Linear(+Tanh) stack -----------------
    # Last layer's weight/bias columns are zero-padded to HIDDEN lanes; the
    # padded coef columns [OUTPUT_SIZE:] are never read below.
    n_layers = len(_LAYER_DIMS)
    coef = None
    for li, (in_d, _out_d) in enumerate(_LAYER_DIMS):
        w = p[_W_OFF[li]:_W_OFF[li] + in_d, :].astype(compute_dtype)
        b = p[_B_OFF[li]:_B_OFF[li] + 1, :]           # (1, HIDDEN) f32
        z = jnp.dot(h.astype(compute_dtype), w,
                    preferred_element_type=jnp.float32) + b
        if li < n_layers - 1:
            # tanh in compute_dtype (bf16 on v6e/v7x -> EUP bf16 path).
            h = jnp.tanh(z.astype(compute_dtype))
        else:
            coef = z                                  # (Bt, HIDDEN) f32

    # --- fw_imp tail: cat([ones, tmp]) * coef, summed over features -----------
    action = coef[:, 0:1] + jnp.sum(tail * coef[:, 1:OUTPUT_SIZE],
                                    axis=1, keepdims=True)   # (Bt, 1) f32

    if not lane_dense:
        out_ref[...] = action
        return

    bt = batch_tile
    r_blocks = bt // 128

    # Zero the over-hang rows of a ragged last block BEFORE the fold matmul so
    # garbage/NaN rows can never contaminate valid outputs (each output row
    # otherwise depends only on its own input row).
    if mask_tail_rows:
        grow = (pl.program_id(0) * bt
                + jax.lax.broadcasted_iota(jnp.int32, (bt, 1), 0))
        action = jnp.where(grow < batch, action, 0.0)

    # Lane-dense fold: out[r, l] = action[r*128 + l], done on the (idle) MXU:
    #   scatter[b, l] = 1  iff  b % 128 == l         (tiled identity)
    #   fold[r, b]    = 1  iff  b // 128 == r        (group selector)
    #   out = fold @ (action * scatter)
    li_ = jax.lax.broadcasted_iota(jnp.int32, (128, 128), 0)
    lj_ = jax.lax.broadcasted_iota(jnp.int32, (128, 128), 1)
    eye128 = jnp.where(li_ == lj_, 1.0, 0.0)                      # (128, 128)
    scatter = jnp.concatenate([eye128] * r_blocks, axis=0)        # (Bt, 128)

    grp = jax.lax.broadcasted_iota(jnp.int32, (r_blocks, bt), 0)
    col = jax.lax.broadcasted_iota(jnp.int32, (r_blocks, bt), 1)
    d = col - grp * 128
    fold = jnp.where((d >= 0) & (d < 128), 1.0, 0.0)              # (R, Bt)

    out_ref[...] = jnp.dot(fold, action * scatter,
                           preferred_element_type=jnp.float32)    # (R, 128)


# ----- params -----------------------------------------------------------------
def init_actor_params(key):
    """Matches the module's explicit init: weight ~ N(0, 1), bias = 0.
    Weights stored as (in_features, out_features) so the kernel computes x @ W + b
    (== PyTorch's x @ weight.T + bias)."""
    params = []
    for in_d, out_d in _LAYER_DIMS:
        key, sub = jax.random.split(key)
        w = jax.random.normal(sub, (in_d, out_d), dtype=jnp.float32)
        b = jnp.zeros((out_d,), dtype=jnp.float32)
        params.append((w, b))
    return params


def pack_actor_params(params):
    """Pack the (W, b) list into one sublane-aligned (P_ROWS, HIDDEN) buffer."""
    packed = jnp.zeros((P_ROWS, HIDDEN_SIZE), jnp.float32)
    for li, (w, b) in enumerate(params):
        in_d, out_d = w.shape
        assert out_d <= HIDDEN_SIZE
        packed = packed.at[_W_OFF[li]:_W_OFF[li] + in_d, :out_d].set(w)
        packed = packed.at[_B_OFF[li], :out_d].set(b)
    return packed


# ----- wrapper ------------------------------------------------------------------
def actor_forward(s, packed_params, *, batch_tile=1024, compute_dtype=None):
    """s: (B, FEAT) f32 -> action (B, 1) f32."""
    batch, feat = s.shape
    assert feat == FEAT
    if compute_dtype is None:
        compute_dtype = _default_compute_dtype()

    if batch < batch_tile:
        # Grid-less path: whole arrays resident in VMEM, one DMA per operand.
        kern = functools.partial(
            actor_kernel, batch=batch, batch_tile=batch, lane_dense=False,
            compute_dtype=compute_dtype, mask_tail_rows=False)
        return pl.pallas_call(
            kern,
            out_shape=jax.ShapeDtypeStruct((batch, 1), jnp.float32),
            in_specs=[pl.BlockSpec(memory_space=pltpu.MemorySpace.VMEM),
                      pl.BlockSpec(memory_space=pltpu.MemorySpace.VMEM)],
            out_specs=pl.BlockSpec(memory_space=pltpu.MemorySpace.VMEM),
        )(s, packed_params)

    # Tiled path: no wrapper-side pad of s; Pallas clips the ragged last block
    # and the kernel zeroes the over-hang rows.  Output is lane-dense (rows,128).
    assert batch_tile % 128 == 0
    n_blocks = pl.cdiv(batch, batch_tile)
    r_blocks = batch_tile // 128
    out_rows = n_blocks * r_blocks       # multiple of the out block => no clipped writes

    kern = functools.partial(
        actor_kernel, batch=batch, batch_tile=batch_tile, lane_dense=True,
        compute_dtype=compute_dtype, mask_tail_rows=(batch % batch_tile) != 0)

    out = pl.pallas_call(
        kern,
        out_shape=jax.ShapeDtypeStruct((out_rows, 128), jnp.float32),
        grid=(n_blocks,),
        in_specs=[pl.BlockSpec((batch_tile, FEAT), lambda i: (i, 0)),
                  pl.BlockSpec((P_ROWS, HIDDEN_SIZE), lambda i: (0, 0))],
        out_specs=pl.BlockSpec((r_blocks, 128), lambda i: (i, 0)),
        compiler_params=pltpu.CompilerParams(
            dimension_semantics=("parallel",)),
    )(s, packed_params)

    # Row-major (rows, 128) == flat per-row actions: free reshape + tiny slice.
    return out.reshape(-1)[:batch].reshape(batch, 1)


# ----- pure-JAX reference --------------------------------------------------------
def actor_reference(s, params):
    x = s[:, :INPUT_SIZE]
    for i, (w, b) in enumerate(params):
        x = x @ w + b
        if i < len(params) - 1:
            x = jnp.tanh(x)
    tail = s[:, INPUT_SIZE:]
    cat = jnp.concatenate([jnp.ones((s.shape[0], 1), dtype=s.dtype), tail], axis=-1)
    return jnp.sum(cat * x, axis=1, keepdims=True)


if __name__ == "__main__":
    key = jax.random.PRNGKey(0)
    key, pkey, k_small, k_big = jax.random.split(key, 4)

    params = init_actor_params(pkey)
    packed = pack_actor_params(params)

    # 1) Small batch -> grid-less path, forced f32 (exact check).
    s_small = jax.random.normal(k_small, (BATCH, FEAT), dtype=jnp.float32)
    act_small = jax.block_until_ready(
        actor_forward(s_small, packed, compute_dtype=jnp.float32))
    ref_small = actor_reference(s_small, params)
    assert act_small.shape == (BATCH, 1)
    assert jnp.allclose(act_small, ref_small, atol=1e-3, rtol=1e-3), \
        "Pallas kernel mismatch vs reference (small batch, f32)"

    # 2) Large ragged batch -> tiled lane-dense path, forced f32.
    #    Exercises the fold matmul, ragged last block and over-hang masking.
    big_batch = 2000
    s_big = jax.random.normal(k_big, (big_batch, FEAT), dtype=jnp.float32)
    act_big_f32 = jax.block_until_ready(
        actor_forward(s_big, packed, compute_dtype=jnp.float32))
    ref_big = actor_reference(s_big, params)
    assert act_big_f32.shape == (big_batch, 1)
    assert jnp.allclose(act_big_f32, ref_big, atol=1e-3, rtol=1e-3), \
        "Pallas kernel mismatch vs reference (tiled lane-dense path, f32)"

    # 3) Large batch, auto compute dtype (bf16 tanh on v6e/v7x, f32 elsewhere).
    #    Exact correctness is established by (1)/(2); this run validates the
    #    bf16 plumbing, so the tolerance is deliberately loose.
    auto_dtype = _default_compute_dtype()
    act_big_auto = jax.block_until_ready(actor_forward(s_big, packed))
    assert act_big_auto.shape == (big_batch, 1)
    assert bool(jnp.all(jnp.isfinite(act_big_auto)))
    if auto_dtype == jnp.float32:
        assert jnp.allclose(act_big_auto, ref_big, atol=1e-3, rtol=1e-3), \
            "Pallas kernel mismatch vs reference (auto dtype = f32)"
    else:
        assert jnp.allclose(act_big_auto, ref_big, atol=1.0, rtol=5e-2), \
            "Pallas kernel grossly off vs reference (auto dtype = bf16)"

    print("KERNEL_OK")
</pallas_src>

<mosaic_0001>
module attributes {stable_mosaic.version = 11 : i64} {
  func.func @actor_kernel(%arg0: memref<8x11xf32, #tpu.memory_space<vmem>>, %arg1: memref<176x32xf32, #tpu.memory_space<vmem>>, %arg2: memref<8x1xf32, #tpu.memory_space<vmem>>) attributes {dimension_semantics = [], scalar_prefetch = 0 : i64, scratch_operands = 0 : i64, tpu.core_type = #tpu.core_type<tc>} {
    %c0 = arith.constant 0 : index
    %c0_0 = arith.constant 0 : index
    %0 = vector.load %arg0[%c0, %c0_0] : memref<8x11xf32, #tpu.memory_space<vmem>>, vector<8x11xf32>
    %c0_1 = arith.constant 0 : index
    %c0_2 = arith.constant 0 : index
    %1 = vector.load %arg1[%c0_1, %c0_2] : memref<176x32xf32, #tpu.memory_space<vmem>>, vector<176x32xf32>
    %2 = vector.extract_strided_slice %0 {offsets = [0, 0], sizes = [8, 8], strides = [1, 1]} : vector<8x11xf32> to vector<8x8xf32>
    %3 = vector.extract_strided_slice %0 {offsets = [0, 8], sizes = [8, 3], strides = [1, 1]} : vector<8x11xf32> to vector<8x3xf32>
    %4 = vector.extract_strided_slice %1 {offsets = [0, 0], sizes = [8, 32], strides = [1, 1]} : vector<176x32xf32> to vector<8x32xf32>
    %5 = vector.extract_strided_slice %1 {offsets = [8, 0], sizes = [1, 32], strides = [1, 1]} : vector<176x32xf32> to vector<1x32xf32>
    %cst = arith.constant dense<0.000000e+00> : vector<8x32xf32>
    %6 = tpu.matmul %2, %4, %cst {dimension_numbers = #tpu.dot_dimension_numbers<[1], [0], [0], [1], [0, 0, 1, 1], [], []>} : vector<8x8xf32>, vector<8x32xf32>, vector<8x32xf32> -> vector<8x32xf32>
    %7 = vector.broadcast %5 : vector<1x32xf32> to vector<8x32xf32>
    %8 = arith.addf %6, %7 : vector<8x32xf32>
    %9 = math.tanh %8 : vector<8x32xf32>
    %10 = vector.extract_strided_slice %1 {offsets = [16, 0], sizes = [32, 32], strides = [1, 1]} : vector<176x32xf32> to vector<32x32xf32>
    %11 = vector.extract_strided_slice %1 {offsets = [48, 0], sizes = [1, 32], strides = [1, 1]} : vector<176x32xf32> to vector<1x32xf32>
    %cst_3 = arith.constant dense<0.000000e+00> : vector<8x32xf32>
    %12 = tpu.matmul %9, %10, %cst_3 {dimension_numbers = #tpu.dot_dimension_numbers<[1], [0], [0], [1], [0, 0, 1, 1], [], []>} : vector<8x32xf32>, vector<32x32xf32>, vector<8x32xf32> -> vector<8x32xf32>
    %13 = vector.broadcast %11 : vector<1x32xf32> to vector<8x32xf32>
    %14 = arith.addf %12, %13 : vector<8x32xf32>
    %15 = math.tanh %14 : vector<8x32xf32>
    %16 = vector.extract_strided_slice %1 {offsets = [56, 0], sizes = [32, 32], strides = [1, 1]} : vector<176x32xf32> to vector<32x32xf32>
    %17 = vector.extract_strided_slice %1 {offsets = [88, 0], sizes = [1, 32], strides = [1, 1]} : vector<176x32xf32> to vector<1x32xf32>
    %cst_4 = arith.constant dense<0.000000e+00> : vector<8x32xf32>
    %18 = tpu.matmul %15, %16, %cst_4 {dimension_numbers = #tpu.dot_dimension_numbers<[1], [0], [0], [1], [0, 0, 1, 1], [], []>} : vector<8x32xf32>, vector<32x32xf32>, vector<8x32xf32> -> vector<8x32xf32>
    %19 = vector.broadcast %17 : vector<1x32xf32> to vector<8x32xf32>
    %20 = arith.addf %18, %19 : vector<8x32xf32>
    %21 = math.tanh %20 : vector<8x32xf32>
    %22 = vector.extract_strided_slice %1 {offsets = [96, 0], sizes = [32, 32], strides = [1, 1]} : vector<176x32xf32> to vector<32x32xf32>
    %23 = vector.extract_strided_slice %1 {offsets = [128, 0], sizes = [1, 32], strides = [1, 1]} : vector<176x32xf32> to vector<1x32xf32>
    %cst_5 = arith.constant dense<0.000000e+00> : vector<8x32xf32>
    %24 = tpu.matmul %21, %22, %cst_5 {dimension_numbers = #tpu.dot_dimension_numbers<[1], [0], [0], [1], [0, 0, 1, 1], [], []>} : vector<8x32xf32>, vector<32x32xf32>, vector<8x32xf32> -> vector<8x32xf32>
    %25 = vector.broadcast %23 : vector<1x32xf32> to vector<8x32xf32>
    %26 = arith.addf %24, %25 : vector<8x32xf32>
    %27 = math.tanh %26 : vector<8x32xf32>
    %28 = vector.extract_strided_slice %1 {offsets = [136, 0], sizes = [32, 32], strides = [1, 1]} : vector<176x32xf32> to vector<32x32xf32>
    %29 = vector.extract_strided_slice %1 {offsets = [168, 0], sizes = [1, 32], strides = [1, 1]} : vector<176x32xf32> to vector<1x32xf32>
    %cst_6 = arith.constant dense<0.000000e+00> : vector<8x32xf32>
    %30 = tpu.matmul %27, %28, %cst_6 {dimension_numbers = #tpu.dot_dimension_numbers<[1], [0], [0], [1], [0, 0, 1, 1], [], []>} : vector<8x32xf32>, vector<32x32xf32>, vector<8x32xf32> -> vector<8x32xf32>
    %31 = vector.broadcast %29 : vector<1x32xf32> to vector<8x32xf32>
    %32 = arith.addf %30, %31 : vector<8x32xf32>
    %33 = vector.extract_strided_slice %32 {offsets = [0, 0], sizes = [8, 1], strides = [1, 1]} : vector<8x32xf32> to vector<8x1xf32>
    %34 = vector.extract_strided_slice %32 {offsets = [0, 1], sizes = [8, 3], strides = [1, 1]} : vector<8x32xf32> to vector<8x3xf32>
    %35 = arith.mulf %3, %34 : vector<8x3xf32>
    %cst_7 = arith.constant dense<0.000000e+00> : vector<8xf32>
    %36 = vector.multi_reduction <add>, %35, %cst_7 [1] : vector<8x3xf32> to vector<8xf32>
    %37 = vector.shape_cast %36 : vector<8xf32> to vector<8x1xf32>
    %38 = arith.addf %33, %37 : vector<8x1xf32>
    %c0_8 = arith.constant 0 : index
    %c0_9 = arith.constant 0 : index
    %39 = vector.load %arg2[%c0_8, %c0_9] : memref<8x1xf32, #tpu.memory_space<vmem>>, vector<8x1xf32>
    tpu.vector_store %arg2[%c0_8, %c0_9], %38 {strides = array<i32>} : memref<8x1xf32, #tpu.memory_space<vmem>>, vector<8x1xf32>,
    return
  }
}

</mosaic_0001>

<llo_original>
// kernel: tpu_custom_call.1
$region0: #{tpu_custom_call.1}
  #allocation0 [shape = 'u32[]', space=smem, size = 0x4, offset = 0x4, fixed_abs, tag = 'smem constant byte address 0x4 - core index']
  #allocation1 [shape = 'u32[72,128]{1,0:T(1,128)}', space=vmem, size = 0x9000, scoped, tag = 'internal scratch']
  %s0 = inlined_call_operand.vmem [shape: f32[8,11], index: 0, kind: input, shape index: {}]
  %s1 = inlined_call_operand.vmem [shape: f32[176,32], index: 1, kind: input, shape index: {}]
  %s2 = inlined_call_operand.vmem [shape: f32[8,1], index: 2, kind: output, shape index: {}]
  %s3 = sld [smem:[#allocation0]]
  $region18: #{tpu_custom_call.1} parent=0
    _
  %s5 = ssub.s32 1, %s3
  %s6 = scalar_select 0, %s5, %s3
  // Predicated region
  $region2: #{tpu_custom_call.1} parent=0 // pred_check
    _
  $region3: #{tpu_custom_call.1} parent=0 // pred_check_branch
    %8 = sbr.rel (0) target = $region5
  $region4: #{tpu_custom_call.1} parent=0 // pred_region
    _
  $region5: #{tpu_custom_call.1} parent=0 // pred_fallthru
    _
  // Predicated region
  $region6: #{tpu_custom_call.1} parent=0 // pred_check
    _
  $region7: #{tpu_custom_call.1} parent=0 // pred_check_branch
    %10 = sbr.rel (0) target = $region9
  $region8: #{tpu_custom_call.1} parent=0 // pred_region
    _
  $region9: #{tpu_custom_call.1} parent=0 // pred_fallthru
    _
  %v11 = vld [vmem:[%s0] sm:$0xff]
  %v12 = vld [vmem:[%s1] sm:$0xff]
  %v13 = vld [vmem:[%s1 + $0x8] sm:$0xff]
  %v14 = vld [vmem:[%s1 + $0x10] sm:$0xff]
  %v15 = vld [vmem:[%s1 + $0x18] sm:$0xff]
  %v16 = vld [vmem:[%s1 + $0x20] sm:$0xff]
  %v17 = vld [vmem:[%s1 + $0x28] sm:$0xff]
  %v18 = vld [vmem:[%s1 + $0x30] sm:$0xff]
  %v19 = vld [vmem:[%s1 + $0x38] sm:$0xff]
  %v20 = vld [vmem:[%s1 + $0x40] sm:$0xff]
  %v21 = vld [vmem:[%s1 + $0x48] sm:$0xff]
  %v22 = vld [vmem:[%s1 + $0x50] sm:$0xff]
  %v23 = vld [vmem:[%s1 + $0x58] sm:$0xff]
  %v24 = vld [vmem:[%s1 + $0x60] sm:$0xff]
  %v25 = vld [vmem:[%s1 + $0x68] sm:$0xff]
  %v26 = vld [vmem:[%s1 + $0x70] sm:$0xff]
  %v27 = vld [vmem:[%s1 + $0x78] sm:$0xff]
  %v28 = vld [vmem:[%s1 + $0x80] sm:$0xff]
  %v29 = vld [vmem:[%s1 + $0x88] sm:$0xff]
  %v30 = vld [vmem:[%s1 + $0x90] sm:$0xff]
  %v31 = vld [vmem:[%s1 + $0x98] sm:$0xff]
  %v32 = vld [vmem:[%s1 + $0xa0] sm:$0xff]
  %v33 = vld [vmem:[%s1 + $0xa8] sm:$0xff]
  %v34 = vperm.slane %v13, 0
  %vm35 = vcmask 64512
  %v37 = vsel %vm35, %v11, 0
  %39 = vmatpush.msra.mxu0 0.0
  %40 = vmatpush.msra.mxu0 0.0
  %41 = vmatpush.msra.mxu0 0.0
  %42 = vmatpush.msra.mxu0 0.0
  %43 = vmatpush.msra.mxu0 0.0
  %44 = vmatpush.msra.mxu0 0.0
  %45 = vmatpush.msra.mxu0 0.0
  %46 = vmatpush.msra.mxu0 0.0
  %47 = vmatpush.msra.mxu0 0.0
  %48 = vmatpush.msra.mxu0 0.0
  %49 = vmatpush.msra.mxu0 0.0
  %50 = vmatpush.msra.mxu0 0.0
  %51 = vmatpush.msra.mxu0 0.0
  %52 = vmatpush.msra.mxu0 0.0
  %53 = vmatpush.msra.mxu0 0.0
  %54 = vmatpush.msra.mxu0 %v12
  %55 = vmatmul.f32.gmra.mxu0 %v37
  %v56 = vpop.f32.mrf.mxu0
  %v57 = vadd.f32 %v34, %v56
  %58 = vdwg.mxu0
  %v59 = vtanh.pop %v57
  %v60 = vperm.slane %v18, 0
  %vm61 = vcmask 261120
  %v63 = vsel %vm61, %v59, 0
  %65 = vmatpush.msra.mxu0 0.0
  %66 = vmatpush.msra.mxu0 0.0
  %67 = vmatpush.msra.mxu0 0.0
  %68 = vmatpush.msra.mxu0 0.0
  %69 = vmatpush.msra.mxu0 0.0
  %70 = vmatpush.msra.mxu0 0.0
  %71 = vmatpush.msra.mxu0 0.0
  %72 = vmatpush.msra.mxu0 0.0
  %73 = vmatpush.msra.mxu0 0.0
  %74 = vmatpush.msra.mxu0 0.0
  %75 = vmatpush.msra.mxu0 0.0
  %76 = vmatpush.msra.mxu0 0.0
  %77 = vmatpush.msra.mxu0 %v17
  %78 = vmatpush.msra.mxu0 %v16
  %79 = vmatpush.msra.mxu0 %v15
  %80 = vmatpush.msra.mxu0 %v14
  %81 = vmatmul.f32.gmra.mxu0 %v63
  %v82 = vpop.f32.mrf.mxu0
  %v83 = vadd.f32 %v60, %v82
  %84 = vdwg.mxu0
  %v85 = vtanh.pop %v83
  %v86 = vperm.slane %v23, 0
  %v88 = vsel %vm61, %v85, 0
  %90 = vmatpush.msra.mxu0 0.0
  %91 = vmatpush.msra.mxu0 0.0
  %92 = vmatpush.msra.mxu0 0.0
  %93 = vmatpush.msra.mxu0 0.0
  %94 = vmatpush.msra.mxu0 0.0
  %95 = vmatpush.msra.mxu0 0.0
  %96 = vmatpush.msra.mxu0 0.0
  %97 = vmatpush.msra.mxu0 0.0
  %98 = vmatpush.msra.mxu0 0.0
  %99 = vmatpush.msra.mxu0 0.0
  %100 = vmatpush.msra.mxu0 0.0
  %101 = vmatpush.msra.mxu0 0.0
  %102 = vmatpush.msra.mxu0 %v22
  %103 = vmatpush.msra.mxu0 %v21
  %104 = vmatpush.msra.mxu0 %v20
  %105 = vmatpush.msra.mxu0 %v19
  %106 = vmatmul.f32.gmra.mxu0 %v88
  %v107 = vpop.f32.mrf.mxu0
  %v108 = vadd.f32 %v86, %v107
  %109 = vdwg.mxu0
  %v110 = vtanh.pop %v108
  %v111 = vperm.slane %v28, 0
  %v113 = vsel %vm61, %v110, 0
  %115 = vmatpush.msra.mxu0 0.0
  %116 = vmatpush.msra.mxu0 0.0
  %117 = vmatpush.msra.mxu0 0.0
  %118 = vmatpush.msra.mxu0 0.0
  %119 = vmatpush.msra.mxu0 0.0
  %120 = vmatpush.msra.mxu0 0.0
  %121 = vmatpush.msra.mxu0 0.0
  %122 = vmatpush.msra.mxu0 0.0
  %123 = vmatpush.msra.mxu0 0.0
  %124 = vmatpush.msra.mxu0 0.0
  %125 = vmatpush.msra.mxu0 0.0
  %126 = vmatpush.msra.mxu0 0.0
  %127 = vmatpush.msra.mxu0 %v27
  %128 = vmatpush.msra.mxu0 %v26
  %129 = vmatpush.msra.mxu0 %v25
  %130 = vmatpush.msra.mxu0 %v24
  %131 = vmatmul.f32.gmra.mxu0 %v113
  %v132 = vpop.f32.mrf.mxu0
  %v133 = vadd.f32 %v111, %v132
  %134 = vdwg.mxu0
  %v135 = vtanh.pop %v133
  %v136 = vperm.slane %v33, 0
  %v138 = vsel %vm61, %v135, 0
  %140 = vmatpush.msra.mxu0 0.0
  %141 = vmatpush.msra.mxu0 0.0
  %142 = vmatpush.msra.mxu0 0.0
  %143 = vmatpush.msra.mxu0 0.0
  %144 = vmatpush.msra.mxu0 0.0
  %145 = vmatpush.msra.mxu0 0.0
  %146 = vmatpush.msra.mxu0 0.0
  %147 = vmatpush.msra.mxu0 0.0
  %148 = vmatpush.msra.mxu0 0.0
  %149 = vmatpush.msra.mxu0 0.0
  %150 = vmatpush.msra.mxu0 0.0
  %151 = vmatpush.msra.mxu0 0.0
  %152 = vmatpush.msra.mxu0 %v32
  %153 = vmatpush.msra.mxu0 %v31
  %154 = vmatpush.msra.mxu0 %v30
  %155 = vmatpush.msra.mxu0 %v29
  %156 = vmatmul.f32.gmra.mxu0 %v138
  %v157 = vpop.f32.mrf.mxu0
  %v158 = vadd.f32 %v136, %v157
  %159 = vdwg.mxu0
  %161 = vrot.lane.b32.xlu0 %v158, 7
  %v162 = vpop.permute.xlu0 %161
  %v164 = vmul.f32 %v11, %v162
  %166 = vrot.lane.b32.xlu0 %v164, 120
  %v167 = vpop.permute.xlu0 %166
  %vm169 = vcmask 23552
  %v170 = vsel %vm169, %v167, 0.0
  %171 = vadd.xlane.f32.xlu0 %v170
  %v172 = vpop.xlane.xlu0 %171
  %v173 = vadd.f32 %v158, %v172
  %vm174 = vcmask 7168
  %175 = vst.msk [vmem:[%s2] sm:$0xff] %vm174, %v173
  // Predicated region
  $region10: #{tpu_custom_call.1} parent=0 // pred_check
    _
  $region11: #{tpu_custom_call.1} parent=0 // pred_check_branch
    %177 = sbr.rel (0) target = $region13
  $region12: #{tpu_custom_call.1} parent=0 // pred_region
    _
  $region13: #{tpu_custom_call.1} parent=0 // pred_fallthru
    _
  // Predicated region
  $region14: #{tpu_custom_call.1} parent=0 // pred_check
    _
  $region15: #{tpu_custom_call.1} parent=0 // pred_check_branch
    %179 = sbr.rel (0) target = $region17
  $region16: #{tpu_custom_call.1} parent=0 // pred_region
    _
  $region17: #{tpu_custom_call.1} parent=0 // pred_fallthru
    _

</llo_original>
